<compile_context>
chip_gen: v5e
topology: v5e:2x2
jax: 0.10.0
libtpu: 0.0.40
codegen_flags: <defaults>
</compile_context>

<pallas_src>
import jax
import jax.numpy as jnp
from jax.experimental import pallas as pl
from jax.experimental.pallas import tpu as pltpu


def _round_up(a, b):
    return -(-a // b) * b


def _vmem_capacity_bytes():
    """Physical VMEM per TensorCore; falls back to the v5e/v6e value."""
    try:
        return int(pltpu.get_tpu_info().vmem_capacity_bytes)
    except Exception:
        return 128 * 1024 * 1024


# ----------------------------- kernels ---------------------------------------


def _ffn_kernel_fused(x_ref, w1_ref, b1_ref, w2_ref, b2_ref, o_ref):
    # Whole d_hidden resident in VMEM: single pass, no accumulator scratch.
    # x_ref : (TM, d_model_p)  already in the compute dtype (cast in wrapper)
    # w1_ref: (d_model_p, d_hidden_p)   b1_ref: (1, d_hidden_p)  (f32)
    # w2_ref: (d_hidden_p, d_model_p)   b2_ref: (1, d_model_p)   (f32)
    h = jnp.dot(x_ref[...], w1_ref[...], preferred_element_type=jnp.float32)
    h = h + b1_ref[...]
    h = jnp.maximum(h, 0.03 * h)  # leaky_relu(negative_slope=0.03), slope < 1
    out = jnp.dot(h.astype(w2_ref.dtype), w2_ref[...],
                  preferred_element_type=jnp.float32) + b2_ref[...]
    o_ref[...] = out.astype(o_ref.dtype)


def _ffn_kernel_acc(x_ref, w1_ref, b1_ref, w2_ref, b2_ref, o_ref, acc_ref):
    # Grid = (m_tiles, k_tiles); k streams d_hidden (reduction axis, last).
    # x_ref : (TM, d_model_p)        w1_ref: (d_model_p, TK)   b1_ref: (1, TK)
    # w2_ref: (TK, d_model_p)        b2_ref: (1, d_model_p)
    # o_ref : (TM, d_model_p)        acc_ref: (TM, d_model_p) f32 scratch
    k = pl.program_id(1)

    @pl.when(k == 0)
    def _():
        acc_ref[...] = jnp.zeros_like(acc_ref)

    h = jnp.dot(x_ref[...], w1_ref[...], preferred_element_type=jnp.float32)
    h = h + b1_ref[...]
    h = jnp.maximum(h, 0.03 * h)  # leaky_relu, single VALU max
    acc_ref[...] += jnp.dot(h.astype(w2_ref.dtype), w2_ref[...],
                            preferred_element_type=jnp.float32)

    @pl.when(k == pl.num_programs(1) - 1)
    def _():
        o_ref[...] = (acc_ref[...] + b2_ref[...]).astype(o_ref.dtype)


# --------------------------- parameter prep ----------------------------------


def prepare_ffn_params(w1, b1, w2, b2, *, compute_dtype=jnp.bfloat16):
    """One-time parameter prep (hoisted out of the forward path).

    PyTorch layouts in:  w1 (d_hidden, d_model), b1 (d_hidden,),
                         w2 (d_model, d_hidden), b2 (d_model,).
    Transposes to x@W layout, zero-pads d_model to a multiple of 128 (lane-dense)
    and d_hidden to a multiple of 256 (full-width 256x256 MXU tiles on v6e/v7x;
    still a 128-multiple for v5e).  Weights are cast to compute_dtype (default
    bf16, f32 MXU accumulation in-kernel); pass compute_dtype=None to keep the
    original dtype.  Biases stay f32 (added against the f32 accumulator).
    """
    d_hidden, d_model = w1.shape
    d_model_p = _round_up(d_model, 128)
    d_hidden_p = _round_up(d_hidden, 256)

    w1_t = jnp.pad(jnp.transpose(w1),
                   ((0, d_model_p - d_model), (0, d_hidden_p - d_hidden)))
    w2_t = jnp.pad(jnp.transpose(w2),
                   ((0, d_hidden_p - d_hidden), (0, d_model_p - d_model)))
    b1_p = jnp.pad(b1, (0, d_hidden_p - d_hidden)).reshape(1, d_hidden_p).astype(jnp.float32)
    b2_p = jnp.pad(b2, (0, d_model_p - d_model)).reshape(1, d_model_p).astype(jnp.float32)

    if compute_dtype is not None:
        w1_t = w1_t.astype(compute_dtype)
        w2_t = w2_t.astype(compute_dtype)

    return dict(
        w1=w1_t, b1=b1_p, w2=w2_t, b2=b2_p,
        d_model=d_model, d_hidden=d_hidden,
        d_model_p=d_model_p, d_hidden_p=d_hidden_p,
    )


# ------------------------------ forward --------------------------------------


def feed_forward_network(x, params, *, tile_m=None, tile_k=None, vmem_limit_bytes=None):
    """x: (..., d_model); params from prepare_ffn_params."""
    d_model = params["d_model"]
    d_model_p = params["d_model_p"]
    d_hidden_p = params["d_hidden_p"]
    assert x.shape[-1] == d_model

    w1, b1, w2, b2 = params["w1"], params["b1"], params["w2"], params["b2"]
    compute_dtype = w1.dtype
    w_isz = jnp.dtype(compute_dtype).itemsize
    out_dtype = x.dtype
    out_isz = jnp.dtype(out_dtype).itemsize

    orig_shape = x.shape
    x2d = x.reshape(-1, d_model)
    m = x2d.shape[0]

    # ---- generation-aware VMEM budget (v5e/v6e: 128 MiB, v7x: 64 MiB) ----
    vmem_cap = _vmem_capacity_bytes()
    if vmem_limit_bytes is None:
        vmem_limit_bytes = min(int(vmem_cap * 0.82), 112 * 1024 * 1024)
    budget = vmem_limit_bytes - 4 * 1024 * 1024  # headroom for compiler scratch

    # ---- activation (token) tile: large, sublane-aligned, >= 2 tiles if possible ----
    if tile_m is None:
        tile_m = 512
    m8 = _round_up(m, 8)
    tile_m_eff = max(8, min(tile_m, m8))
    if m8 > 8:
        # keep at least two m tiles so the "parallel" axis can feed both v7x TCs
        tile_m_eff = min(tile_m_eff, max(8, _round_up(-(-m // 2), 8)))

    def _fixed_bytes(tm):
        return (2 * tm * d_model_p * w_isz        # x tile, double-buffered (compute dtype)
                + 2 * tm * d_model_p * out_isz    # out tile, double-buffered
                + 2 * d_model_p * 4)              # b2 (grid-invariant, 2 bufs)

    # ---- hidden (reduction) tile: prefer fully VMEM-resident weights (num_k == 1) ----
    if tile_k is None:
        def _pick_tile_k(tm):
            full_w = 2 * 2 * d_model_p * d_hidden_p * w_isz + 2 * d_hidden_p * 4
            if _fixed_bytes(tm) + full_w <= budget:
                return d_hidden_p                      # W1/W2 fully resident
            acc_bytes = tm * d_model_p * 4             # f32 accumulator scratch
            rem = budget - _fixed_bytes(tm) - acc_bytes
            if rem <= 0:
                return 0
            per_k = 2 * 2 * d_model_p * w_isz + 2 * 4  # W1 col + W2 row (x2 buf) + b1
            return min(d_hidden_p, (rem // per_k // 256) * 256)

        tk = _pick_tile_k(tile_m_eff)
        # If the weight tile collapses below one full 256-wide MXU block, trade
        # activation tile size for reduction tile size (v7x 64 MiB case).
        while tk < 256 and tile_m_eff > 128:
            tile_m_eff = max(128, tile_m_eff // 2)
            tk = _pick_tile_k(tile_m_eff)
        tile_k = tk if tk >= 256 else 256

    tile_k = int(max(128, min(tile_k, d_hidden_p)))
    tile_k -= tile_k % 128
    while d_hidden_p % tile_k != 0:  # largest 128-multiple divisor not above request
        tile_k -= 128
    num_k = d_hidden_p // tile_k

    m_p = _round_up(m, tile_m_eff)
    grid_m = m_p // tile_m_eff

    # ---- pad AND cast x once in the wrapper (no per-k cast in the kernel) ----
    xc = x2d.astype(compute_dtype) if x2d.dtype != compute_dtype else x2d
    needs_pad = (m_p != m) or (d_model_p != d_model)
    if needs_pad:
        xc = jnp.pad(xc, ((0, m_p - m), (0, d_model_p - d_model)))

    # ---- advisory cost estimate for the XLA scheduler ----
    weight_stream_factor = 1 if num_k == 1 else grid_m
    cost = pl.CostEstimate(
        flops=int(4 * m_p * d_model_p * d_hidden_p),
        transcendentals=0,
        bytes_accessed=int(
            m_p * d_model_p * (w_isz + out_isz)
            + weight_stream_factor * 2 * d_model_p * d_hidden_p * w_isz
            + d_hidden_p * 4 + d_model_p * 4),
    )

    if num_k == 1:
        # Fused single-pass kernel: no accumulator scratch, weights grid-invariant.
        out = pl.pallas_call(
            _ffn_kernel_fused,
            out_shape=jax.ShapeDtypeStruct((m_p, d_model_p), out_dtype),
            grid_spec=pltpu.PrefetchScalarGridSpec(
                num_scalar_prefetch=0,
                grid=(grid_m,),
                in_specs=[
                    pl.BlockSpec((tile_m_eff, d_model_p), lambda i: (i, 0)),     # x
                    pl.BlockSpec((d_model_p, d_hidden_p), lambda i: (0, 0)),     # W1
                    pl.BlockSpec((1, d_hidden_p), lambda i: (0, 0)),             # b1
                    pl.BlockSpec((d_hidden_p, d_model_p), lambda i: (0, 0)),     # W2
                    pl.BlockSpec((1, d_model_p), lambda i: (0, 0)),              # b2
                ],
                out_specs=pl.BlockSpec((tile_m_eff, d_model_p), lambda i: (i, 0)),
            ),
            compiler_params=pltpu.CompilerParams(
                dimension_semantics=("parallel",),
                vmem_limit_bytes=vmem_limit_bytes,
            ),
            cost_estimate=cost,
        )(xc, w1, b1, w2, b2)
    else:
        # Streamed d_hidden reduction with f32 VMEM accumulator.
        out = pl.pallas_call(
            _ffn_kernel_acc,
            out_shape=jax.ShapeDtypeStruct((m_p, d_model_p), out_dtype),
            grid_spec=pltpu.PrefetchScalarGridSpec(
                num_scalar_prefetch=0,
                grid=(grid_m, num_k),
                in_specs=[
                    pl.BlockSpec((tile_m_eff, d_model_p), lambda i, k: (i, 0)),  # x
                    pl.BlockSpec((d_model_p, tile_k), lambda i, k: (0, k)),      # W1
                    pl.BlockSpec((1, tile_k), lambda i, k: (0, k)),              # b1
                    pl.BlockSpec((tile_k, d_model_p), lambda i, k: (k, 0)),      # W2
                    pl.BlockSpec((1, d_model_p), lambda i, k: (0, 0)),           # b2
                ],
                out_specs=pl.BlockSpec((tile_m_eff, d_model_p), lambda i, k: (i, 0)),
                scratch_shapes=[pltpu.VMEM((tile_m_eff, d_model_p), jnp.float32)],
            ),
            compiler_params=pltpu.CompilerParams(
                dimension_semantics=("parallel", "arbitrary"),
                vmem_limit_bytes=vmem_limit_bytes,
            ),
            cost_estimate=cost,
        )(xc, w1, b1, w2, b2)

    if needs_pad:
        out = out[:m, :d_model]
    return out.reshape(orig_shape)


# ----------------------------- test helpers ----------------------------------


def init_params(key, d_model, d_hidden, dtype=jnp.float32):
    """Mirrors the PyTorch module init: linear1.weight kaiming_normal_
    (fan_in=d_model), other params default nn.Linear uniform."""
    k1, k2, k3, k4 = jax.random.split(key, 4)
    std1 = (2.0 / d_model) ** 0.5
    w1 = (jax.random.normal(k1, (d_hidden, d_model)) * std1).astype(dtype)
    bound1 = 1.0 / (d_model ** 0.5)
    b1 = jax.random.uniform(k2, (d_hidden,), minval=-bound1, maxval=bound1).astype(dtype)
    bound2 = 1.0 / (d_hidden ** 0.5)
    w2 = jax.random.uniform(k3, (d_model, d_hidden), minval=-bound2, maxval=bound2).astype(dtype)
    b2 = jax.random.uniform(k4, (d_model,), minval=-bound2, maxval=bound2).astype(dtype)
    return w1, b1, w2, b2


def _reference(x, w1, b1, w2, b2):
    h = x @ w1.T + b1
    h = jnp.where(h >= 0, h, 0.03 * h)
    return h @ w2.T + b2


if __name__ == "__main__":
    key = jax.random.PRNGKey(0)
    kx, kp = jax.random.split(key)

    # Small, lane-aligned demo shapes.
    batch, seq, d_model, d_hidden = 2, 8, 128, 256
    x = jax.random.normal(kx, (batch, seq, d_model), dtype=jnp.float32)
    w1, b1, w2, b2 = init_params(kp, d_model, d_hidden, dtype=jnp.float32)
    ref = _reference(x, w1, b1, w2, b2)

    # f32 compute path with forced tile_k=128 (num_k=2): exercises the
    # streamed-reduction kernel with the f32 accumulator.
    params_f32 = prepare_ffn_params(w1, b1, w2, b2, compute_dtype=None)
    out = jax.block_until_ready(feed_forward_network(x, params_f32, tile_k=128))
    assert out.shape == ref.shape and out.dtype == ref.dtype
    assert jnp.allclose(out, ref, atol=1e-4, rtol=1e-4)

    # Default bf16 compute path (f32 accumulation), weights fully VMEM-resident
    # -> fused single-pass kernel, x cast to bf16 once in the wrapper.
    params_bf16 = prepare_ffn_params(w1, b1, w2, b2)
    out_bf16 = jax.block_until_ready(feed_forward_network(x, params_bf16))
    assert out_bf16.dtype == x.dtype
    assert jnp.allclose(out_bf16, ref, atol=2e-1, rtol=5e-2)

    # Ragged / non-lane-aligned shapes exercise the padding path (no divisibility
    # assert); default tiling -> fused kernel.
    b2_, s2_, dm2, dh2 = 3, 7, 96, 200
    x2 = jax.random.normal(jax.random.PRNGKey(1), (b2_, s2_, dm2), dtype=jnp.float32)
    w1r, b1r, w2r, b2r = init_params(jax.random.PRNGKey(2), dm2, dh2)
    params_r = prepare_ffn_params(w1r, b1r, w2r, b2r, compute_dtype=None)
    ref2 = _reference(x2, w1r, b1r, w2r, b2r)
    out2 = jax.block_until_ready(feed_forward_network(x2, params_r))
    assert jnp.allclose(out2, ref2, atol=1e-4, rtol=1e-4)

    # Same ragged params, forced small tile_k -> accumulator kernel + padding.
    out3 = jax.block_until_ready(feed_forward_network(x2, params_r, tile_k=128))
    assert jnp.allclose(out3, ref2, atol=1e-4, rtol=1e-4)

    print("KERNEL_OK")
</pallas_src>

<mosaic_0001>
module attributes {stable_mosaic.version = 11 : i64} {
  func.func @_ffn_kernel_acc(%arg0: i32, %arg1: i32, %arg2: memref<8x128xf32, #tpu.memory_space<vmem>>, %arg3: memref<128x128xf32, #tpu.memory_space<vmem>>, %arg4: memref<1x128xf32, #tpu.memory_space<vmem>>, %arg5: memref<128x128xf32, #tpu.memory_space<vmem>>, %arg6: memref<1x128xf32, #tpu.memory_space<vmem>>, %arg7: memref<8x128xf32, #tpu.memory_space<vmem>>, %arg8: memref<8x128xf32, #tpu.memory_space<vmem>>) attributes {dimension_semantics = [#tpu.dimension_semantics<parallel>, #tpu.dimension_semantics<arbitrary>], iteration_bounds = array<i64: 2, 2>, scalar_prefetch = 0 : i64, scratch_operands = 1 : i64, tpu.core_type = #tpu.core_type<tc>, window_params = [{transform_indices = @transform_0, window_bounds = array<i64: 8, 128>}, {transform_indices = @transform_1, window_bounds = array<i64: 128, 128>}, {transform_indices = @transform_2, window_bounds = array<i64: 1, 128>}, {transform_indices = @transform_3, window_bounds = array<i64: 128, 128>}, {pipeline_mode = #tpu.pipeline_mode<synchronous>, transform_indices = @transform_4, window_bounds = array<i64: 1, 128>}, {transform_indices = @transform_5, window_bounds = array<i64: 8, 128>}]} {
    %c0_i32 = arith.constant 0 : i32
    %0 = arith.cmpi eq, %arg1, %c0_i32 : i32
    %1 = arith.extui %0 : i1 to i32
    %c0_i32_0 = arith.constant 0 : i32
    %2 = arith.cmpi ne, %1, %c0_i32_0 : i32
    scf.if %2 {
      %cst_15 = arith.constant 0.000000e+00 : f32
      %20 = vector.broadcast %cst_15 : f32 to vector<8x128xf32>
      %c0_16 = arith.constant 0 : index
      %c0_17 = arith.constant 0 : index
      %21 = vector.load %arg8[%c0_16, %c0_17] : memref<8x128xf32, #tpu.memory_space<vmem>>, vector<8x128xf32>
      tpu.vector_store %arg8[%c0_16, %c0_17], %20 {strides = array<i32>} : memref<8x128xf32, #tpu.memory_space<vmem>>, vector<8x128xf32>,
    } else {
    }
    %c0 = arith.constant 0 : index
    %c0_1 = arith.constant 0 : index
    %3 = vector.load %arg2[%c0, %c0_1] : memref<8x128xf32, #tpu.memory_space<vmem>>, vector<8x128xf32>
    %c0_2 = arith.constant 0 : index
    %c0_3 = arith.constant 0 : index
    %4 = vector.load %arg3[%c0_2, %c0_3] : memref<128x128xf32, #tpu.memory_space<vmem>>, vector<128x128xf32>
    %cst = arith.constant dense<0.000000e+00> : vector<8x128xf32>
    %5 = tpu.matmul %3, %4, %cst {dimension_numbers = #tpu.dot_dimension_numbers<[1], [0], [0], [1], [0, 0, 1, 1], [], []>} : vector<8x128xf32>, vector<128x128xf32>, vector<8x128xf32> -> vector<8x128xf32>
    %c0_4 = arith.constant 0 : index
    %c0_5 = arith.constant 0 : index
    %6 = vector.load %arg4[%c0_4, %c0_5] : memref<1x128xf32, #tpu.memory_space<vmem>>, vector<1x128xf32>
    %7 = vector.broadcast %6 : vector<1x128xf32> to vector<8x128xf32>
    %8 = arith.addf %5, %7 : vector<8x128xf32>
    %cst_6 = arith.constant 3.000000e-02 : f32
    %9 = vector.broadcast %cst_6 : f32 to vector<8x128xf32>
    %10 = arith.mulf %9, %8 : vector<8x128xf32>
    %11 = arith.maximumf %8, %10 : vector<8x128xf32>
    %c0_7 = arith.constant 0 : index
    %c0_8 = arith.constant 0 : index
    %12 = vector.load %arg8[%c0_7, %c0_8] : memref<8x128xf32, #tpu.memory_space<vmem>>, vector<8x128xf32>
    %c0_9 = arith.constant 0 : index
    %c0_10 = arith.constant 0 : index
    %13 = vector.load %arg5[%c0_9, %c0_10] : memref<128x128xf32, #tpu.memory_space<vmem>>, vector<128x128xf32>
    %cst_11 = arith.constant dense<0.000000e+00> : vector<8x128xf32>
    %14 = tpu.matmul %11, %13, %cst_11 {dimension_numbers = #tpu.dot_dimension_numbers<[1], [0], [0], [1], [0, 0, 1, 1], [], []>} : vector<8x128xf32>, vector<128x128xf32>, vector<8x128xf32> -> vector<8x128xf32>
    %15 = arith.addf %12, %14 : vector<8x128xf32>
    %c0_12 = arith.constant 0 : index
    %c0_13 = arith.constant 0 : index
    %16 = vector.load %arg8[%c0_12, %c0_13] : memref<8x128xf32, #tpu.memory_space<vmem>>, vector<8x128xf32>
    tpu.vector_store %arg8[%c0_12, %c0_13], %15 {strides = array<i32>} : memref<8x128xf32, #tpu.memory_space<vmem>>, vector<8x128xf32>,
    %c1_i32 = arith.constant 1 : i32
    %17 = arith.cmpi eq, %arg1, %c1_i32 : i32
    %18 = arith.extui %17 : i1 to i32
    %c0_i32_14 = arith.constant 0 : i32
    %19 = arith.cmpi ne, %18, %c0_i32_14 : i32
    scf.if %19 {
      %c0_15 = arith.constant 0 : index
      %c0_16 = arith.constant 0 : index
      %20 = vector.load %arg8[%c0_15, %c0_16] : memref<8x128xf32, #tpu.memory_space<vmem>>, vector<8x128xf32>
      %c0_17 = arith.constant 0 : index
      %c0_18 = arith.constant 0 : index
      %21 = vector.load %arg6[%c0_17, %c0_18] : memref<1x128xf32, #tpu.memory_space<vmem>>, vector<1x128xf32>
      %22 = vector.broadcast %21 : vector<1x128xf32> to vector<8x128xf32>
      %23 = arith.addf %20, %22 : vector<8x128xf32>
      %c0_19 = arith.constant 0 : index
      %c0_20 = arith.constant 0 : index
      %24 = vector.load %arg7[%c0_19, %c0_20] : memref<8x128xf32, #tpu.memory_space<vmem>>, vector<8x128xf32>
      tpu.vector_store %arg7[%c0_19, %c0_20], %23 {strides = array<i32>} : memref<8x128xf32, #tpu.memory_space<vmem>>, vector<8x128xf32>,
    } else {
    }
    return
  }
  func.func @transform_0(%arg0: i32, %arg1: i32) -> (i32, i32) {
    %c0_i32 = arith.constant 0 : i32
    %c0_i32_0 = arith.constant 0 : i32
    return %arg0, %c0_i32 : i32, i32
  }
  func.func @transform_1(%arg0: i32, %arg1: i32) -> (i32, i32) {
    %c0_i32 = arith.constant 0 : i32
    %c0_i32_0 = arith.constant 0 : i32
    return %c0_i32, %arg1 : i32, i32
  }
  func.func @transform_2(%arg0: i32, %arg1: i32) -> (i32, i32) {
    %c0_i32 = arith.constant 0 : i32
    %c0_i32_0 = arith.constant 0 : i32
    return %c0_i32, %arg1 : i32, i32
  }
  func.func @transform_3(%arg0: i32, %arg1: i32) -> (i32, i32) {
    %c0_i32 = arith.constant 0 : i32
    %c0_i32_0 = arith.constant 0 : i32
    return %arg1, %c0_i32 : i32, i32
  }
  func.func @transform_4(%arg0: i32, %arg1: i32) -> (i32, i32) {
    %c0_i32 = arith.constant 0 : i32
    %c0_i32_0 = arith.constant 0 : i32
    %c0_i32_1 = arith.constant 0 : i32
    return %c0_i32, %c0_i32_0 : i32, i32
  }
  func.func @transform_5(%arg0: i32, %arg1: i32) -> (i32, i32) {
    %c0_i32 = arith.constant 0 : i32
    %c0_i32_0 = arith.constant 0 : i32
    return %arg0, %c0_i32 : i32, i32
  }
}

</mosaic_0001>

<llo_original>
// kernel: tpu_custom_call.1
$region0: #{tpu_custom_call.1}
  #allocation0 [shape = 'u32[]', space=smem, size = 0x4, offset = 0x4, fixed_abs, tag = 'smem constant byte address 0x4 - core index']
  #allocation1 [shape = 'u32[72,128]{1,0:T(1,128)}', space=vmem, size = 0x9000, scoped, tag = 'internal scratch']
  #allocation2 [shape = 'f32[8,128]{1,0:T(8,128)}', space=vmem, size = 0x1000, scoped, tag = 'scratch operand']
  %s0 = inlined_call_operand.hbm [shape: f32[16,128], index: 0, kind: input, shape index: {}]
  %s1 = inlined_call_operand.hbm [shape: f32[128,256], index: 1, kind: input, shape index: {}]
  %s2 = inlined_call_operand.hbm [shape: f32[1,256], index: 2, kind: input, shape index: {}]
  %s3 = inlined_call_operand.hbm [shape: f32[256,128], index: 3, kind: input, shape index: {}]
  %s4 = inlined_call_operand.vmem [shape: f32[1,128], index: 4, kind: input, shape index: {}]
  %s5 = inlined_call_operand.hbm [shape: f32[16,128], index: 5, kind: output, shape index: {}]
  %s6 = sld [smem:[#allocation0]]
  $region77: #{tpu_custom_call.1} parent=0
    _
  %s8 = ssub.s32 1, %s6
  %s9 = scalar_select 0, %s8, %s6
  $region1: #{tpu_custom_call.1} parent=0
    #allocation3 [shape = 'u8[8192]{0}', space=vmem, size = 0x2000, scoped, tag = 'input window, operand 0']
    #allocation4 [shape = 's32[2]{0}', space=sflag, size = 0x8, scoped, tag = 'scoped memory for tpu_custom_call.1']
    #allocation5 [shape = 's32[2]{0}', space=sflag, size = 0x8, scoped, tag = 'scoped memory for tpu_custom_call.1']
    #allocation6 [shape = 'u8[131072]{0}', space=vmem, size = 0x20000, scoped, tag = 'input window, operand 1']
    #allocation7 [shape = 's32[2]{0}', space=sflag, size = 0x8, scoped, tag = 'scoped memory for tpu_custom_call.1']
    #allocation8 [shape = 'u8[1024]{0}', space=vmem, size = 0x400, scoped, tag = 'input window, operand 2']
    #allocation9 [shape = 'u8[131072]{0}', space=vmem, size = 0x20000, scoped, tag = 'input window, operand 3']
    #allocation10 [shape = 's32[2]{0}', space=sflag, size = 0x8, scoped, tag = 'scoped memory for tpu_custom_call.1']
    #allocation11 [shape = 'u8[8192]{0}', space=vmem, size = 0x2000, scoped, tag = 'output window, operand 0']
    %10 = vsyncpa [#allocation4], 0
    %s11 = scalar_lea.sflag [#allocation4], 1
    %12 = vsyncpa %s11, 0
    %13 = vsyncpa [#allocation7], 0
    %s14 = scalar_lea.sflag [#allocation7], 1
    %15 = vsyncpa %s14, 0
    %16 = vsyncpa [#allocation10], 0
    %s17 = scalar_lea.sflag [#allocation10], 1
    %18 = vsyncpa %s17, 0
    %19 = vsyncpa [#allocation5], 0
    %s20 = scalar_lea.sflag [#allocation5], 1
    %21 = vsyncpa %s20, 0
    loop: start=0, step=1, limit=6
    $region2: #{tpu_custom_call.1} parent=1 // loop_pre_header
      _
    $region3: #{tpu_custom_call.1} parent=1 // loop_header
      %s23 = sphi 0, %s27
      %p24 = scmp.ge.s32.totalorder %s23, 6
      %s30 = sphi 0, %s42
      %s31 = sphi 0, %s38
      %s32 = sphi 0, %s30
      %s33 = sphi 0, %s31
      %s34 = sphi 0, %s32
      %s35 = sphi 0, %s33
      %s45 = sphi 0, %s47
      %s48 = sphi 0, %s45
      %s49 = sphi 0, %s48
      %s65 = sphi 0, %s49
      %s71 = sphi 0, %s73
      %s74 = sphi 0, %s71
      %s75 = sphi 0, %s74
      %s91 = sphi 0, %s75
      %s97 = sphi 0, %s99
      %s100 = sphi 0, %s97
      %s101 = sphi 0, %s100
      %s117 = sphi 0, %s101
      %s123 = sphi 0, %s125
      %s126 = sphi 0, %s123
      %s127 = sphi 0, %s126
      %s143 = sphi 0, %s127
      %s147 = sphi 0, %s147
      %s149 = sphi 0, %s147
      %s150 = sphi 0, %s149
      %s164 = sphi 0, %s150
      %s170 = sphi 0, %s172
      %s173 = sphi 0, %s170
      %s174 = sphi 0, %s173
      %s190 = sphi 0, %s174
    $region4: #{tpu_custom_call.1} parent=1 // loop_header_branch
      %26 = sbr.rel (%p24) target = $region8
    $region5: #{tpu_custom_call.1} parent=1 // loop_body
      %s28 = ssub.s32 %s23, 1
      %s29 = ssub.s32 %s23, 2
      %s36 = sadd.s32 1, %s31
      %p37 = scmp.ge.s32.totalorder %s36, 2
      %s38 = scalar_select %p37, 0, %s36
      %s39 = sadd.s32 1, %s30
      %s40 = scalar_select %p37, %s39, %s30
      %p41 = scmp.ge.s32.totalorder %s40, 2
      %s42 = scalar_select %p41, 0, %s40
      %s43 = ssub.s32 %s30, %s42
      %p44 = scmp.eq.s32.totalorder %s43, 0
      %s46 = sadd.s32 %s45, 1
      %s47 = scalar_select %p44, %s45, %s46
      %p50 = pneg %p44
      %p51 = scmp.eq.s32.totalorder %s23, 3
      %p52 = por %p50, %p51
      %p53 = scmp.ne.s32.totalorder %s45, %s48
      %p54 = scmp.eq.s32.totalorder %s23, 0
      %p55 = por %p53, %p54
      %p56 = scmp.ne.s32.totalorder %s45, %s48
      %p57 = scmp.eq.s32.totalorder %s28, 3
      %p58 = por %p56, %p57
      %p59 = scmp.ne.s32.totalorder %s48, %s49
      %p60 = scmp.eq.s32.totalorder %s28, 0
      %p61 = por %p59, %p60
      %p62 = scmp.ne.s32.totalorder %s48, %s49
      %p63 = scmp.eq.s32.totalorder %s29, 3
      %p64 = por %p62, %p63
      %p66 = scmp.ne.s32.totalorder %s49, %s65
      %p67 = scmp.eq.s32.totalorder %s29, 0
      %p68 = por %p66, %p67
      %s69 = ssub.s32 %s31, %s38
      %p70 = scmp.eq.s32.totalorder %s69, 0
      %s72 = sadd.s32 %s71, 1
      %s73 = scalar_select %p70, %s71, %s72
      %p76 = pneg %p70
      %p77 = scmp.eq.s32.totalorder %s23, 3
      %p78 = por %p76, %p77
      %p79 = scmp.ne.s32.totalorder %s71, %s74
      %p80 = scmp.eq.s32.totalorder %s23, 0
      %p81 = por %p79, %p80
      %p82 = scmp.ne.s32.totalorder %s71, %s74
      %p83 = scmp.eq.s32.totalorder %s28, 3
      %p84 = por %p82, %p83
      %p85 = scmp.ne.s32.totalorder %s74, %s75
      %p86 = scmp.eq.s32.totalorder %s28, 0
      %p87 = por %p85, %p86
      %p88 = scmp.ne.s32.totalorder %s74, %s75
      %p89 = scmp.eq.s32.totalorder %s29, 3
      %p90 = por %p88, %p89
      %p92 = scmp.ne.s32.totalorder %s75, %s91
      %p93 = scmp.eq.s32.totalorder %s29, 0
      %p94 = por %p92, %p93
      %s95 = ssub.s32 %s31, %s38
      %p96 = scmp.eq.s32.totalorder %s95, 0
      %s98 = sadd.s32 %s97, 1
      %s99 = scalar_select %p96, %s97, %s98
      %p102 = pneg %p96
      %p103 = scmp.eq.s32.totalorder %s23, 3
      %p104 = por %p102, %p103
      %p105 = scmp.ne.s32.totalorder %s97, %s100
      %p106 = scmp.eq.s32.totalorder %s23, 0
      %p107 = por %p105, %p106
      %p108 = scmp.ne.s32.totalorder %s97, %s100
      %p109 = scmp.eq.s32.totalorder %s28, 3
      %p110 = por %p108, %p109
      %p111 = scmp.ne.s32.totalorder %s100, %s101
      %p112 = scmp.eq.s32.totalorder %s28, 0
      %p113 = por %p111, %p112
      %p114 = scmp.ne.s32.totalorder %s100, %s101
      %p115 = scmp.eq.s32.totalorder %s29, 3
      %p116 = por %p114, %p115
      %p118 = scmp.ne.s32.totalorder %s101, %s117
      %p119 = scmp.eq.s32.totalorder %s29, 0
      %p120 = por %p118, %p119
      %s121 = ssub.s32 %s31, %s38
      %p122 = scmp.eq.s32.totalorder %s121, 0
      %s124 = sadd.s32 %s123, 1
      %s125 = scalar_select %p122, %s123, %s124
      %p128 = pneg %p122
      %p129 = scmp.eq.s32.totalorder %s23, 3
      %p130 = por %p128, %p129
      %p131 = scmp.ne.s32.totalorder %s123, %s126
      %p132 = scmp.eq.s32.totalorder %s23, 0
      %p133 = por %p131, %p132
      %p134 = scmp.ne.s32.totalorder %s123, %s126
      %p135 = scmp.eq.s32.totalorder %s28, 3
      %p136 = por %p134, %p135
      %p137 = scmp.ne.s32.totalorder %s126, %s127
      %p138 = scmp.eq.s32.totalorder %s28, 0
      %p139 = por %p137, %p138
      %p140 = scmp.ne.s32.totalorder %s126, %s127
      %p141 = scmp.eq.s32.totalorder %s29, 3
      %p142 = por %p140, %p141
      %p144 = scmp.ne.s32.totalorder %s127, %s143
      %p145 = scmp.eq.s32.totalorder %s29, 0
      %p146 = por %p144, %p145
      %s148 = sadd.s32 %s147, 1
      %p151 = scmp.eq.s32.totalorder %s23, 3
      %p152 = scmp.ne.s32.totalorder %s147, %s149
      %p153 = scmp.eq.s32.totalorder %s23, 0
      %p154 = por %p152, %p153
      %p155 = scmp.ne.s32.totalorder %s147, %s149
      %p156 = scmp.eq.s32.totalorder %s28, 3
      %p157 = por %p155, %p156
      %p158 = scmp.ne.s32.totalorder %s149, %s150
      %p159 = scmp.eq.s32.totalorder %s28, 0
      %p160 = por %p158, %p159
      %p161 = scmp.ne.s32.totalorder %s149, %s150
      %p162 = scmp.eq.s32.totalorder %s29, 3
      %p163 = por %p161, %p162
      %p165 = scmp.ne.s32.totalorder %s150, %s164
      %p166 = scmp.eq.s32.totalorder %s29, 0
      %p167 = por %p165, %p166
      %s168 = ssub.s32 %s30, %s42
      %p169 = scmp.eq.s32.totalorder %s168, 0
      %s171 = sadd.s32 %s170, 1
      %s172 = scalar_select %p169, %s170, %s171
      %p175 = pneg %p169
      %p176 = scmp.eq.s32.totalorder %s23, 3
      %p177 = por %p175, %p176
      %p178 = scmp.ne.s32.totalorder %s170, %s173
      %p179 = scmp.eq.s32.totalorder %s23, 0
      %p180 = por %p178, %p179
      %p181 = scmp.ne.s32.totalorder %s170, %s173
      %p182 = scmp.eq.s32.totalorder %s28, 3
      %p183 = por %p181, %p182
      %p184 = scmp.ne.s32.totalorder %s173, %s174
      %p185 = scmp.eq.s32.totalorder %s28, 0
      %p186 = por %p184, %p185
      %p187 = scmp.ne.s32.totalorder %s173, %s174
      %p188 = scmp.eq.s32.totalorder %s29, 3
      %p189 = por %p187, %p188
      %p191 = scmp.ne.s32.totalorder %s174, %s190
      %p192 = scmp.eq.s32.totalorder %s29, 0
      %p193 = por %p191, %p192
      %p194 = scmp.le.s32.totalorder 1, %s23
      %p195 = scmp.lt.s32.totalorder %s23, 5
      %p196 = pnand %p194, %p195
      %p197 = pneg %p196
      // Predicated region
      $region9: #{tpu_custom_call.1} parent=5 // pred_check
        _
      $region10: #{tpu_custom_call.1} parent=5 // pred_check_branch
        %199 = sbr.rel (%p196) target = $region12
      $region11: #{tpu_custom_call.1} parent=5 // pred_region
        %s200 = ssub.s32 %s23, 1
        // Predicated region
        $region13: #{tpu_custom_call.1} parent=11 // pred_check
          %p201 = pneg %p160
        $region14: #{tpu_custom_call.1} parent=11 // pred_check_branch
          %203 = sbr.rel (%p201) target = $region16
        $region15: #{tpu_custom_call.1} parent=11 // pred_region
          _
        $region16: #{tpu_custom_call.1} parent=11 // pred_fallthru
          _
      $region12: #{tpu_custom_call.1} parent=5 // pred_fallthru
        _
      %p204 = scmp.lt.s32.totalorder %s23, 4
      // Predicated region
      $region17: #{tpu_custom_call.1} parent=5 // pred_check
        %p205 = pneg %p204
      $region18: #{tpu_custom_call.1} parent=5 // pred_check_branch
        %207 = sbr.rel (%p205) target = $region20
      $region19: #{tpu_custom_call.1} parent=5 // pred_region
        // Predicated region
        $region21: #{tpu_custom_call.1} parent=19 // pred_check
          %p208 = pneg %p55
        $region22: #{tpu_custom_call.1} parent=19 // pred_check_branch
          %210 = sbr.rel (%p208) target = $region24
        $region23: #{tpu_custom_call.1} parent=19 // pred_region
          %s211 = sand.u32 %s45, 1
          %s212 = scalar_lea.sflag [#allocation4], %s211
          %s213 = sand.u32 %s45, 1
          %s214 = smul.addr %s213, 8
          %s215 = scalar_lea.vmem [#allocation3], %s214
          %217 = vsyncadd %s212, 0
          %s218 = smul.addr %s30, 8
          %s219 = scalar_lea.hbm %s0, %s218
          %s221 = sshll.u32 %s219, 4
          %s222 = int_to_ptr.hbm [resolvable:$true] %s221
          %s223 = sshll.u32 %s215, 4
          %s224 = int_to_ptr.vmem [resolvable:$true] %s223
          %226 = dma.hbm_to_vmem [thread:$0]  %s222, 128, %s224, %s212
        $region24: #{tpu_custom_call.1} parent=19 // pred_fallthru
          _
        // Predicated region
        $region25: #{tpu_custom_call.1} parent=19 // pred_check
          %p227 = pneg %p81
        $region26: #{tpu_custom_call.1} parent=19 // pred_check_branch
          %229 = sbr.rel (%p227) target = $region28
        $region27: #{tpu_custom_call.1} parent=19 // pred_region
          %s230 = sand.u32 %s23, 1
          %s231 = scalar_lea.sflag [#allocation7], %s230
          %s232 = sand.u32 %s71, 1
          %s233 = smul.addr %s232, 128
          %s234 = scalar_lea.vmem [#allocation6], %s233
          %236 = vsyncadd %s231, 0
          %s237 = smul.addr %s31, 8
          %s238 = scalar_lea.hbm %s1, %s237
          %s239 = sshll.u32 %s238, 4
          %s240 = int_to_ptr.hbm [resolvable:$true] %s239
          %s241 = sshll.u32 %s234, 4
          %s242 = int_to_ptr.vmem [resolvable:$true] %s241
          %247 = dma.hbm_to_vmem [thread:$0]  %s240, 2048, %s242, %s231, 256, 128, 8
        $region28: #{tpu_custom_call.1} parent=19 // pred_fallthru
          _
        // Predicated region
        $region29: #{tpu_custom_call.1} parent=19 // pred_check
          %p248 = pneg %p107
        $region30: #{tpu_custom_call.1} parent=19 // pred_check_branch
          %250 = sbr.rel (%p248) target = $region32
        $region31: #{tpu_custom_call.1} parent=19 // pred_region
          %s251 = sand.u32 %s23, 1
          %s252 = scalar_lea.sflag [#allocation7], %s251
          %s253 = sand.u32 %s97, 1
          %s254 = scalar_lea.vmem [#allocation8], %s253
          %256 = vsyncadd %s252, 0
          %s257 = scalar_lea.hbm %s2, %s31
          %s259 = sshll.u32 %s257, 4
          %s260 = int_to_ptr.hbm [resolvable:$true] %s259
          %s261 = sshll.u32 %s254, 4
          %s262 = int_to_ptr.vmem [resolvable:$true] %s261
          %264 = dma.hbm_to_vmem [thread:$0]  %s260, 16, %s262, %s252
        $region32: #{tpu_custom_call.1} parent=19 // pred_fallthru
          _
        // Predicated region
        $region33: #{tpu_custom_call.1} parent=19 // pred_check
          %p265 = pneg %p133
        $region34: #{tpu_custom_call.1} parent=19 // pred_check_branch
          %267 = sbr.rel (%p265) target = $region36
        $region35: #{tpu_custom_call.1} parent=19 // pred_region
          %s268 = sand.u32 %s123, 1
          %s269 = scalar_lea.sflag [#allocation10], %s268
          %s270 = sand.u32 %s123, 1
          %s271 = smul.addr %s270, 128
          %s272 = scalar_lea.vmem [#allocation9], %s271
          %s273 = smul.u32 16, %s31
          %275 = vsyncadd %s269, 0
          %s276 = smul.addr %s273, 8
          %s277 = scalar_lea.hbm %s3, %s276
          %s278 = sshll.u32 %s277, 4
          %s279 = int_to_ptr.hbm [resolvable:$true] %s278
          %s280 = sshll.u32 %s272, 4
          %s281 = int_to_ptr.vmem [resolvable:$true] %s280
          %286 = dma.hbm_to_vmem [thread:$0]  %s279, 2048, %s281, %s269, 128, 128, 8
        $region36: #{tpu_custom_call.1} parent=19 // pred_fallthru
          _
      $region20: #{tpu_custom_call.1} parent=5 // pred_fallthru
        _
      %p287 = scmp.le.s32.totalorder 1, %s23
      %p288 = scmp.lt.s32.totalorder %s23, 5
      %p289 = pnand %p287, %p288
      %p290 = pneg %p289
      // Predicated region
      $region37: #{tpu_custom_call.1} parent=5 // pred_check
        _
      $region38: #{tpu_custom_call.1} parent=5 // pred_check_branch
        %292 = sbr.rel (%p289) target = $region40
      $region39: #{tpu_custom_call.1} parent=5 // pred_region
        %s293 = ssub.s32 %s23, 1
        %s294 = sand.u32 %s48, 1
        %s295 = scalar_lea.sflag [#allocation4], %s294
        %s296 = sand.u32 %s48, 1
        %s297 = smul.addr %s296, 8
        %s298 = scalar_lea.vmem [#allocation3], %s297
        // Predicated region
        $region41: #{tpu_custom_call.1} parent=39 // pred_check
          %p299 = pneg %p61
        $region42: #{tpu_custom_call.1} parent=39 // pred_check_branch
          %301 = sbr.rel (%p299) target = $region44
        $region43: #{tpu_custom_call.1} parent=39 // pred_region
          %303 = dma.done %s295, 128
        $region44: #{tpu_custom_call.1} parent=39 // pred_fallthru
          _
        %s304 = sand.u32 %s28, 1
        %s305 = scalar_lea.sflag [#allocation7], %s304
        %s306 = sand.u32 %s74, 1
        %s307 = smul.addr %s306, 128
        %s308 = scalar_lea.vmem [#allocation6], %s307
        // Predicated region
        $region45: #{tpu_custom_call.1} parent=39 // pred_check
          %p309 = pneg %p87
        $region46: #{tpu_custom_call.1} parent=39 // pred_check_branch
          %311 = sbr.rel (%p309) target = $region48
        $region47: #{tpu_custom_call.1} parent=39 // pred_region
          %313 = dma.done %s305, 2048
        $region48: #{tpu_custom_call.1} parent=39 // pred_fallthru
          _
        %s314 = sand.u32 %s28, 1
        %s315 = scalar_lea.sflag [#allocation7], %s314
        %s316 = sand.u32 %s100, 1
        %s317 = scalar_lea.vmem [#allocation8], %s316
        // Predicated region
        $region49: #{tpu_custom_call.1} parent=39 // pred_check
          %p318 = pneg %p113
        $region50: #{tpu_custom_call.1} parent=39 // pred_check_branch
          %320 = sbr.rel (%p318) target = $region52
        $region51: #{tpu_custom_call.1} parent=39 // pred_region
          %322 = dma.done %s315, 16
        $region52: #{tpu_custom_call.1} parent=39 // pred_fallthru
          _
        %s323 = sand.u32 %s126, 1
        %s324 = scalar_lea.sflag [#allocation10], %s323
        %s325 = sand.u32 %s126, 1
        %s326 = smul.addr %s325, 128
        %s327 = scalar_lea.vmem [#allocation9], %s326
        // Predicated region
        $region53: #{tpu_custom_call.1} parent=39 // pred_check
          %p328 = pneg %p139
        $region54: #{tpu_custom_call.1} parent=39 // pred_check_branch
          %330 = sbr.rel (%p328) target = $region56
        $region55: #{tpu_custom_call.1} parent=39 // pred_region
          %332 = dma.done %s324, 2048
        $region56: #{tpu_custom_call.1} parent=39 // pred_fallthru
          _
        %s333 = sand.u32 %s48, 1
        %s334 = scalar_lea.sflag [#allocation4], %s333
        %s335 = sand.u32 %s48, 1
        %s336 = smul.addr %s335, 8
        %s337 = scalar_lea.vmem [#allocation3], %s336
        %p338 = pneg %p61
        %p339 = pneg %p58
        %s340 = sand.u32 %s28, 1
        %s341 = scalar_lea.sflag [#allocation7], %s340
        %s342 = sand.u32 %s74, 1
        %s343 = smul.addr %s342, 128
        %s344 = scalar_lea.vmem [#allocation6], %s343
        %p345 = pneg %p87
        %p346 = pneg %p84
        %s347 = sand.u32 %s28, 1
        %s348 = scalar_lea.sflag [#allocation7], %s347
        %s349 = sand.u32 %s100, 1
        %s350 = scalar_lea.vmem [#allocation8], %s349
        %p351 = pneg %p113
        %p352 = pneg %p110
        %s353 = sand.u32 %s126, 1
        %s354 = scalar_lea.sflag [#allocation10], %s353
        %s355 = sand.u32 %s126, 1
        %s356 = smul.addr %s355, 128
        %s357 = scalar_lea.vmem [#allocation9], %s356
        %p358 = pneg %p139
        %p359 = pneg %p136
        %p360 = pneg %p160
        %p361 = pneg %p157
        %p362 = pneg %p186
        %p363 = pneg %p183
        %s364 = sand.u32 %s173, 1
        %s365 = scalar_lea.sflag [#allocation5], %s364
        %s366 = sand.u32 %s173, 1
        %s367 = smul.addr %s366, 8
        %s368 = scalar_lea.vmem [#allocation11], %s367
        %s369 = smul.u32 16, %s33
        %p370 = scmp.eq.s32.totalorder %s33, 0
        // Predicated region
        $region57: #{tpu_custom_call.1} parent=39 // pred_check
          %p371 = pneg %p370
        $region58: #{tpu_custom_call.1} parent=39 // pred_check_branch
          %373 = sbr.rel (%p371) target = $region60
        $region59: #{tpu_custom_call.1} parent=39 // pred_region
          %374 = vst [vmem:[#allocation2] sm:$0xff] 0.0
        $region60: #{tpu_custom_call.1} parent=39 // pred_fallthru
          _
        %v375 = vld [vmem:[%s298] sm:$0xff]
        %v376 = vld [vmem:[%s308] sm:$0xff]
        %v377 = vld [vmem:[%s308 + $0x8] sm:$0xff]
        %v378 = vld [vmem:[%s308 + $0x10] sm:$0xff]
        %v379 = vld [vmem:[%s308 + $0x18] sm:$0xff]
        %v380 = vld [vmem:[%s308 + $0x20] sm:$0xff]
        %v381 = vld [vmem:[%s308 + $0x28] sm:$0xff]
        %v382 = vld [vmem:[%s308 + $0x30] sm:$0xff]
        %v383 = vld [vmem:[%s308 + $0x38] sm:$0xff]
        %v384 = vld [vmem:[%s308 + $0x40] sm:$0xff]
        %v385 = vld [vmem:[%s308 + $0x48] sm:$0xff]
        %v386 = vld [vmem:[%s308 + $0x50] sm:$0xff]
        %v387 = vld [vmem:[%s308 + $0x58] sm:$0xff]
        %v388 = vld [vmem:[%s308 + $0x60] sm:$0xff]
        %v389 = vld [vmem:[%s308 + $0x68] sm:$0xff]
        %v390 = vld [vmem:[%s308 + $0x70] sm:$0xff]
        %v391 = vld [vmem:[%s308 + $0x78] sm:$0xff]
        %v392 = vld [vmem:[%s317] sm:$0x1]
        %v394 = vperm.slane %v392, 0
        %396 = vmatpush.msra.mxu0 %v391
        %397 = vmatpush.msra.mxu0 %v390
        %398 = vmatpush.msra.mxu0 %v389
        %399 = vmatpush.msra.mxu0 %v388
        %400 = vmatpush.msra.mxu0 %v387
        %401 = vmatpush.msra.mxu0 %v386
        %402 = vmatpush.msra.mxu0 %v385
        %403 = vmatpush.msra.mxu0 %v384
        %404 = vmatpush.msra.mxu0 %v383
        %405 = vmatpush.msra.mxu0 %v382
        %406 = vmatpush.msra.mxu0 %v381
        %407 = vmatpush.msra.mxu0 %v380
        %408 = vmatpush.msra.mxu0 %v379
        %409 = vmatpush.msra.mxu0 %v378
        %410 = vmatpush.msra.mxu0 %v377
        %411 = vmatpush.msra.mxu0 %v376
        %412 = vmatmul.f32.gmra.mxu0 %v375
        %v413 = vpop.f32.mrf.mxu0
        %v414 = vadd.f32 %v394, %v413
        %415 = vdwg.mxu0
        %v416 = vmul.f32 %v414, 0.03
        %v417 = vmax.f32 %v414, %v416
        %v418 = vld [vmem:[#allocation2] sm:$0xff]
        %v419 = vld [vmem:[%s327] sm:$0xff]
        %v420 = vld [vmem:[%s327 + $0x8] sm:$0xff]
        %v421 = vld [vmem:[%s327 + $0x10] sm:$0xff]
        %v422 = vld [vmem:[%s327 + $0x18] sm:$0xff]
        %v423 = vld [vmem:[%s327 + $0x20] sm:$0xff]
        %v424 = vld [vmem:[%s327 + $0x28] sm:$0xff]
        %v425 = vld [vmem:[%s327 + $0x30] sm:$0xff]
        %v426 = vld [vmem:[%s327 + $0x38] sm:$0xff]
        %v427 = vld [vmem:[%s327 + $0x40] sm:$0xff]
        %v428 = vld [vmem:[%s327 + $0x48] sm:$0xff]
        %v429 = vld [vmem:[%s327 + $0x50] sm:$0xff]
        %v430 = vld [vmem:[%s327 + $0x58] sm:$0xff]
        %v431 = vld [vmem:[%s327 + $0x60] sm:$0xff]
        %v432 = vld [vmem:[%s327 + $0x68] sm:$0xff]
        %v433 = vld [vmem:[%s327 + $0x70] sm:$0xff]
        %v434 = vld [vmem:[%s327 + $0x78] sm:$0xff]
        %435 = vmatpush.msra.mxu0 %v434
        %436 = vmatpush.msra.mxu0 %v433
        %437 = vmatpush.msra.mxu0 %v432
        %438 = vmatpush.msra.mxu0 %v431
        %439 = vmatpush.msra.mxu0 %v430
        %440 = vmatpush.msra.mxu0 %v429
        %441 = vmatpush.msra.mxu0 %v428
        %442 = vmatpush.msra.mxu0 %v427
        %443 = vmatpush.msra.mxu0 %v426
        %444 = vmatpush.msra.mxu0 %v425
        %445 = vmatpush.msra.mxu0 %v424
        %446 = vmatpush.msra.mxu0 %v423
        %447 = vmatpush.msra.mxu0 %v422
        %448 = vmatpush.msra.mxu0 %v421
        %449 = vmatpush.msra.mxu0 %v420
        %450 = vmatpush.msra.mxu0 %v419
        %451 = vmatmul.f32.gmra.mxu0 %v417
        %v452 = vpop.f32.mrf.mxu0
        %v453 = vadd.f32 0.0, %v452
        %454 = vdwg.mxu0
        %v455 = vadd.f32 %v418, %v453
        %456 = vst [vmem:[#allocation2] sm:$0xff] %v455
        %p457 = scmp.eq.s32.totalorder %s33, 1
        // Predicated region
        $region61: #{tpu_custom_call.1} parent=39 // pred_check
          %p458 = pneg %p457
        $region62: #{tpu_custom_call.1} parent=39 // pred_check_branch
          %460 = sbr.rel (%p458) target = $region64
        $region63: #{tpu_custom_call.1} parent=39 // pred_region
          %v461 = vld [vmem:[#allocation2] sm:$0xff]
          %v462 = vld [vmem:[%s4] sm:$0x1]
          %v464 = vperm.slane %v462, 0
          %v466 = vadd.f32 %v461, %v464
          %467 = vst [vmem:[%s368] sm:$0xff] %v466
        $region64: #{tpu_custom_call.1} parent=39 // pred_fallthru
          _
        %s468 = sand.u32 %s173, 1
        %s469 = scalar_lea.sflag [#allocation5], %s468
        %s470 = sand.u32 %s173, 1
        %s471 = smul.addr %s470, 8
        %s472 = scalar_lea.vmem [#allocation11], %s471
        // Predicated region
        $region65: #{tpu_custom_call.1} parent=39 // pred_check
          %p473 = pneg %p183
        $region66: #{tpu_custom_call.1} parent=39 // pred_check_branch
          %475 = sbr.rel (%p473) target = $region68
        $region67: #{tpu_custom_call.1} parent=39 // pred_region
          %477 = vsyncadd %s469, 0
          %s478 = smul.addr %s32, 8
          %s479 = scalar_lea.hbm %s5, %s478
          %s481 = sshll.u32 %s472, 4
          %s482 = int_to_ptr.vmem [resolvable:$true] %s481
          %s483 = sshll.u32 %s479, 4
          %s484 = int_to_ptr.hbm [resolvable:$true] %s483
          %486 = dma.vmem_to_hbm [thread:$0]  %s482, 128, %s484, %s469
        $region68: #{tpu_custom_call.1} parent=39 // pred_fallthru
          _
      $region40: #{tpu_custom_call.1} parent=5 // pred_fallthru
        _
      %p487 = scmp.le.s32.totalorder 2, %s23
      // Predicated region
      $region69: #{tpu_custom_call.1} parent=5 // pred_check
        %p488 = pneg %p487
      $region70: #{tpu_custom_call.1} parent=5 // pred_check_branch
        %490 = sbr.rel (%p488) target = $region72
      $region71: #{tpu_custom_call.1} parent=5 // pred_region
        %s491 = ssub.s32 %s23, 2
        // Predicated region
        $region73: #{tpu_custom_call.1} parent=71 // pred_check
          %p492 = pneg %p189
        $region74: #{tpu_custom_call.1} parent=71 // pred_check_branch
          %494 = sbr.rel (%p492) target = $region76
        $region75: #{tpu_custom_call.1} parent=71 // pred_region
          %s495 = sand.u32 %s174, 1
          %s496 = scalar_lea.sflag [#allocation5], %s495
          %s497 = sand.u32 %s174, 1
          %s498 = smul.addr %s497, 8
          %s499 = scalar_lea.vmem [#allocation11], %s498
          %501 = dma.done %s496, 128
        $region76: #{tpu_custom_call.1} parent=71 // pred_fallthru
          _
      $region72: #{tpu_custom_call.1} parent=5 // pred_fallthru
        _
    $region6: #{tpu_custom_call.1} parent=1 // loop_footer
      %s27 = sadd.s32 1, %s23
    $region7: #{tpu_custom_call.1} parent=1 // loop_footer_branch
      %22 = sbr.rel target = $region3
    $region8: #{tpu_custom_call.1} parent=1 // loop_exit
      _
    %502 = vsyncpa [#allocation4], 1
    %s503 = scalar_lea.sflag [#allocation4], 1
    %504 = vsyncpa %s503, 1
    %505 = vsyncpa [#allocation7], 1
    %s506 = scalar_lea.sflag [#allocation7], 1
    %507 = vsyncpa %s506, 1
    %508 = vsyncpa [#allocation10], 1
    %s509 = scalar_lea.sflag [#allocation10], 1
    %510 = vsyncpa %s509, 1
    %511 = vsyncpa [#allocation5], 1
    %s512 = scalar_lea.sflag [#allocation5], 1
    %513 = vsyncpa %s512, 1

</llo_original>
